<compile_context>
chip_gen: v5e
topology: v5e:2x2
jax: 0.10.0
libtpu: 0.0.40
codegen_flags: <defaults>
</compile_context>

<pallas_src>
import functools
import math

import jax
import jax.numpy as jnp
from jax.experimental import pallas as pl
from jax.experimental.pallas import tpu as pltpu

_LANE_CANDIDATES = (512, 256, 128)   # lane widths (multiples of 128 -> unmasked stores)


def _chip_tuning():
    """Per-generation block cap / scoped-VMEM limit / minimum grid-step target."""
    kind = ""
    try:
        kind = jax.devices()[0].device_kind.lower()
    except Exception:
        pass
    if "v7" in kind:
        # ~3.2 TB/s HBM: 8 MiB blocks amortize the ~0.35 us/step overhead.
        # 2 in-bufs + 2 out-bufs = 32 MiB -> raise the scoped-VMEM limit
        # (64 MiB physical).  2 TensorCores -> aim for >=4 grid steps.
        return {"max_block_bytes": 8 << 20, "vmem_limit_bytes": 48 << 20, "min_steps": 4}
    if "v6" in kind:
        # 4 x 4 MiB = 16 MiB fits the 32 MiB scoped default; single TC -> >=2 steps.
        return {"max_block_bytes": 4 << 20, "vmem_limit_bytes": None, "min_steps": 2}
    # v5e / unknown: 16 MiB scoped-VMEM default -> stay at 2 MiB blocks (8 MiB total).
    return {"max_block_bytes": 2 << 20, "vmem_limit_bytes": None, "min_steps": 2}


def _sublane_multiple(dtype):
    """Minimum second-to-last block dim for this dtype: f32->8, bf16->16, int8->32."""
    return max(8, 32 // jnp.dtype(dtype).itemsize)


def _pick_block_rows(rows, lanes, itemsize, sub, max_block_bytes, min_steps):
    """Cap-sized, sublane-aligned row blocks; partial tail allowed (grid uses cdiv).

    Small arrays are split into ~min_steps blocks so the DMA pipeline (and, on
    v7x, the second TensorCore) has overlapping work; large arrays get the full
    VMEM-cap block with no extra serial steps (each step costs ~0.35 us fixed).
    """
    if rows <= sub:
        return rows                                    # full-dim block, grid=(1,)
    bpr = lanes * itemsize
    cap = max(sub, (max_block_bytes // bpr) // sub * sub)
    want = ((pl.cdiv(rows, min_steps) + sub - 1) // sub) * sub
    return max(sub, min(cap, want))


def _act_lsq_kernel(alpha_ref, x_ref, o_ref, *, qn, qp):
    """One tile of: round(clamp(x / alpha, Qn, Qp)) * alpha  (elementwise).

    alpha_ref: SMEM f32[1].  Compute is f32 regardless of activation dtype
    (v5e's VPU has no bf16 ALU; alpha stays fp32 like the PyTorch Parameter);
    HBM/VMEM traffic stays in the activation dtype.  A true f32 divide is used
    so results are bit-exact vs torch's x / alpha; the kernel is HBM-bound so
    the divide is free (VPU/EUP slack).
    """
    alpha = alpha_ref[0]
    xf = x_ref[...].astype(jnp.float32)
    xs = jnp.clip(xf / alpha, qn, qp)
    o_ref[...] = (jnp.round(xs) * alpha).astype(o_ref.dtype)


def _run_tiles(kern, alpha, x2d, block_rows, *, vmem_limit_bytes=None,
               donate_input=False):
    rows, lanes = x2d.shape
    n = rows * lanes
    itemsize = jnp.dtype(x2d.dtype).itemsize
    extra = {"input_output_aliases": {1: 0}} if donate_input else {}
    return pl.pallas_call(
        kern,
        out_shape=jax.ShapeDtypeStruct((rows, lanes), x2d.dtype),
        grid=(pl.cdiv(rows, block_rows),),             # partial tail block is masked
        in_specs=[
            pl.BlockSpec(memory_space=pltpu.MemorySpace.SMEM),    # alpha (f32[1])
            pl.BlockSpec((block_rows, lanes), lambda i: (i, 0)),  # activation tile
        ],
        out_specs=pl.BlockSpec((block_rows, lanes), lambda i: (i, 0)),
        compiler_params=pltpu.CompilerParams(
            # "parallel" shards grid steps across v7x's two TensorCores
            # (no-op on single-TC v5e/v6e).
            # TODO(synk): verify megacore engagement on a v7x trace; switch to
            # pltpu.CORE_PARALLEL / explicit core axis if it does not engage.
            dimension_semantics=("parallel",),
            vmem_limit_bytes=vmem_limit_bytes),
        cost_estimate=pl.CostEstimate(                 # bandwidth-bound hint for XLA
            flops=5 * n, transcendentals=0, bytes_accessed=2 * n * itemsize),
        **extra,
    )(alpha, x2d)


def _quant_jnp(x, alpha_f32, qn, qp):
    """Plain-XLA fallback for sub-128-element tails (same arithmetic as kernel)."""
    xf = x.astype(jnp.float32)
    return (jnp.round(jnp.clip(xf / alpha_f32, qn, qp)) * alpha_f32).astype(x.dtype)


def act_lsq_quantize(x, alpha, *, nbits, signed,
                     max_block_bytes=None, donate_input=False):
    """Pallas-backed ActLSQ forward:  round(clamp(x / alpha, Qn, Qp)) * alpha.

    Set donate_input=True (ideally under jax.jit(..., donate_argnums=...)) when
    the caller no longer needs x: the output then reuses x's HBM buffer.
    """
    if signed:
        qn, qp = -(2 ** (nbits - 1)), 2 ** (nbits - 1) - 1
    else:
        qn, qp = 0, 2 ** nbits - 1

    tune = _chip_tuning()
    if max_block_bytes is None:
        max_block_bytes = tune["max_block_bytes"]
    vmem_limit = tune["vmem_limit_bytes"]
    if vmem_limit is None:
        footprint = 4 * max_block_bytes + (8 << 20)    # 2 in + 2 out buffers + slack
        if footprint > (16 << 20):                     # above the v5e scoped default
            vmem_limit = footprint

    dtype = x.dtype
    shape = x.shape
    n = x.size
    itemsize = jnp.dtype(dtype).itemsize
    sub = _sublane_multiple(dtype)

    # alpha stays fp32 (like the PyTorch Parameter) whatever x's dtype.
    alpha_f32 = jnp.asarray(alpha, jnp.float32).reshape(1)

    kern = functools.partial(_act_lsq_kernel, qn=float(qn), qp=float(qp))

    # ---- fast path: n divisible by a lane width -> pure reshape, zero copies ----
    for lanes in _LANE_CANDIDATES:
        if n % lanes != 0:
            continue
        rows = n // lanes
        block_rows = _pick_block_rows(rows, lanes, itemsize, sub,
                                      max_block_bytes, tune["min_steps"])
        out = _run_tiles(kern, alpha_f32, x.reshape(rows, lanes), block_rows,
                         vmem_limit_bytes=vmem_limit, donate_input=donate_input)
        return out.reshape(shape)

    # ---- ragged path (rare): aligned prefix via the kernel, tiny tail via XLA ----
    # TODO(synk): the concatenate costs one extra output-sized pass; fold the tail
    # into the kernel with a masked 1-row tile if ragged shapes ever matter.
    flat = x.reshape(-1)
    a_scalar = alpha_f32[0]
    n_main = (n // 128) * 128
    if n_main == 0:
        return _quant_jnp(flat, a_scalar, qn, qp).reshape(shape)
    lanes = 128
    rows = n_main // lanes
    block_rows = _pick_block_rows(rows, lanes, itemsize, sub,
                                  max_block_bytes, tune["min_steps"])
    main = _run_tiles(kern, alpha_f32, flat[:n_main].reshape(rows, lanes),
                      block_rows, vmem_limit_bytes=vmem_limit)
    tail = _quant_jnp(flat[n_main:], a_scalar, qn, qp)
    return jnp.concatenate([main.reshape(-1), tail]).reshape(shape)


class ActLSQ:
    """JAX/Pallas port of the PyTorch ActLSQ module (forward value path).

    `alpha` is initialized on the first call with the module's training-mode rule
    (2 * mean|x| / sqrt(Qp)); `signed` is set from the input sign, mirroring the
    init_state logic.  grad_scale / round_pass only alter gradients, so the
    forward value is round(clamp(x / alpha, Qn, Qp)) * alpha.
    """
    # TODO(synk): straight-through-estimator gradients (grad_scale / round_pass)
    # are backward-only and not implemented in this forward kernel.

    def __init__(self, nbits_a=4):
        self.nbits = nbits_a
        self.alpha = None
        self.signed = False
        self.init_state = False

    def __call__(self, x):
        if self.nbits < 0:
            return x  # "fake" mode (alpha is None in the PyTorch module)
        if not self.init_state:
            # One-time scalar init — plain-JAX glue (whole-tensor reductions).
            self.signed = bool(jnp.min(x) < -1e-5)
            qp = (2 ** (self.nbits - 1) - 1) if self.signed else (2 ** self.nbits - 1)
            self.alpha = 2.0 * jnp.mean(jnp.abs(x).astype(jnp.float32)) / math.sqrt(qp)
            self.init_state = True
        return act_lsq_quantize(x, self.alpha, nbits=self.nbits, signed=self.signed)


def _reference(x, alpha, nbits, signed):
    """Same arithmetic as the kernel: true f32 divide, round, rescale."""
    if signed:
        qn, qp = -(2 ** (nbits - 1)), 2 ** (nbits - 1) - 1
    else:
        qn, qp = 0, 2 ** nbits - 1
    a = jnp.asarray(alpha, jnp.float32)
    xf = x.astype(jnp.float32)
    return (jnp.round(jnp.clip(xf / a, qn, qp)) * a).astype(x.dtype)


if __name__ == "__main__":
    key = jax.random.PRNGKey(0)
    k0, k1, k2, k3, k4 = jax.random.split(key, 5)

    # 1) Module-style usage at the spec's small NCHW activation shape.
    x = jax.random.normal(k0, (2, 4, 16, 16), dtype=jnp.float32)
    act = ActLSQ(nbits_a=4)
    y = jax.block_until_ready(act(x))
    assert y.shape == x.shape and y.dtype == x.dtype
    assert jnp.allclose(y, _reference(x, act.alpha, act.nbits, act.signed),
                        atol=1e-6, rtol=0)

    # 2) Larger f32 activation under jit with a donated input (output reuses x's
    #    HBM buffer); multi-step grid with cap-sized blocks.
    xb = jax.random.normal(k1, (8, 32, 64, 64), dtype=jnp.float32)
    ref_b = jax.block_until_ready(_reference(xb, 0.75, 4, True))
    quant_donate = jax.jit(
        lambda t: act_lsq_quantize(t, 0.75, nbits=4, signed=True, donate_input=True),
        donate_argnums=(0,))
    yb = jax.block_until_ready(quant_donate(xb))
    assert jnp.allclose(yb, ref_b, atol=1e-6, rtol=0)

    # 3) bf16 activations: narrow HBM traffic, f32 compute, fp32 alpha.
    xh = jnp.abs(jax.random.normal(k2, (2, 8, 32, 32), dtype=jnp.bfloat16))
    yh = act_lsq_quantize(xh, 0.4, nbits=4, signed=False)
    assert yh.dtype == jnp.bfloat16
    assert jnp.allclose(yh.astype(jnp.float32),
                        _reference(xh, 0.4, 4, False).astype(jnp.float32),
                        atol=1e-6, rtol=0)

    # 4) Ragged size (not a multiple of 128): prefix through the kernel (with a
    #    masked partial tail block) + plain-XLA remainder.
    xr = jax.random.normal(k3, (3, 5, 7, 11), dtype=jnp.float32)
    yr = act_lsq_quantize(xr, 0.6, nbits=4, signed=True)
    assert yr.shape == xr.shape
    assert jnp.allclose(yr, _reference(xr, 0.6, 4, True), atol=1e-6, rtol=0)

    # 5) Forced-small-block config: exercises the multi-step tiled path.
    xs_ = jax.random.normal(k4, (4, 16, 32, 32), dtype=jnp.float32)
    ys_ = act_lsq_quantize(xs_, 0.5, nbits=4, signed=True, max_block_bytes=128 * 1024)
    assert jnp.allclose(ys_, _reference(xs_, 0.5, 4, True), atol=1e-6, rtol=0)

    print("KERNEL_OK")
</pallas_src>

<mosaic_0001>
module attributes {stable_mosaic.version = 11 : i64} {
  func.func @_act_lsq_kernel(%arg0: i32, %arg1: memref<1xf32, #tpu.memory_space<smem>>, %arg2: memref<4x512xf32, #tpu.memory_space<vmem>>, %arg3: memref<4x512xf32, #tpu.memory_space<vmem>>) attributes {dimension_semantics = [#tpu.dimension_semantics<parallel>], iteration_bounds = array<i64: 1>, scalar_prefetch = 0 : i64, scratch_operands = 0 : i64, tpu.core_type = #tpu.core_type<tc>, window_params = [{transform_indices = @transform_0, window_bounds = array<i64: 1>}, {transform_indices = @transform_1, window_bounds = array<i64: 4, 512>}, {transform_indices = @transform_2, window_bounds = array<i64: 4, 512>}]} {
    %c0 = arith.constant 0 : index
    %0 = memref.load %arg1[%c0] : memref<1xf32, #tpu.memory_space<smem>>
    %c0_0 = arith.constant 0 : index
    %c0_1 = arith.constant 0 : index
    %1 = vector.load %arg2[%c0_0, %c0_1] : memref<4x512xf32, #tpu.memory_space<vmem>>, vector<4x512xf32>
    %2 = vector.broadcast %0 : f32 to vector<4x512xf32>
    %3 = arith.divf %1, %2 : vector<4x512xf32>
    %cst = arith.constant -8.000000e+00 : f32
    %cst_2 = arith.constant 7.000000e+00 : f32
    %4 = vector.broadcast %cst : f32 to vector<4x512xf32>
    %5 = arith.maximumf %4, %3 : vector<4x512xf32>
    %6 = vector.broadcast %cst_2 : f32 to vector<4x512xf32>
    %7 = arith.minimumf %6, %5 : vector<4x512xf32>
    %8 = math.roundeven %7 : vector<4x512xf32>
    %9 = vector.broadcast %0 : f32 to vector<4x512xf32>
    %10 = arith.mulf %8, %9 : vector<4x512xf32>
    %c0_3 = arith.constant 0 : index
    %c0_4 = arith.constant 0 : index
    %11 = vector.load %arg3[%c0_3, %c0_4] : memref<4x512xf32, #tpu.memory_space<vmem>>, vector<4x512xf32>
    tpu.vector_store %arg3[%c0_3, %c0_4], %10 {strides = array<i32>} : memref<4x512xf32, #tpu.memory_space<vmem>>, vector<4x512xf32>,
    return
  }
  func.func @transform_0(%arg0: i32) -> i32 {
    %c0_i32 = arith.constant 0 : i32
    %c0_i32_0 = arith.constant 0 : i32
    return %c0_i32 : i32
  }
  func.func @transform_1(%arg0: i32) -> (i32, i32) {
    %c0_i32 = arith.constant 0 : i32
    %c0_i32_0 = arith.constant 0 : i32
    return %arg0, %c0_i32 : i32, i32
  }
  func.func @transform_2(%arg0: i32) -> (i32, i32) {
    %c0_i32 = arith.constant 0 : i32
    %c0_i32_0 = arith.constant 0 : i32
    return %arg0, %c0_i32 : i32, i32
  }
}

</mosaic_0001>

<llo_original>
// kernel: tpu_custom_call.1
$region0: #{tpu_custom_call.1}
  #allocation0 [shape = 'u32[]', space=smem, size = 0x4, offset = 0x4, fixed_abs, tag = 'smem constant byte address 0x4 - core index']
  #allocation1 [shape = 'u32[72,128]{1,0:T(1,128)}', space=vmem, size = 0x9000, scoped, tag = 'internal scratch']
  #allocation2 [shape = 'f32[1]{0:T(128)S(6)}', space=smem, size = 0x200, scoped, tag = 'scoped memory for tpu_custom_call.1']
  %s0 = inlined_call_operand.<no memory space> [shape: f32[1], index: 0, kind: input, shape index: {}]
  %s1 = inlined_call_operand.hbm [shape: f32[4,512], index: 1, kind: input, shape index: {}]
  %s2 = inlined_call_operand.hbm [shape: f32[4,512], index: 2, kind: output, shape index: {}]
  %s3 = sld [smem:[#allocation0]]
  $region22: #{tpu_custom_call.1} parent=0
    _
  %s5 = ssub.s32 1, %s3
  %s6 = scalar_select 0, %s5, %s3
  %7 = sst [smem:[#allocation2]] %s0
  $region1: #{tpu_custom_call.1} parent=0
    #allocation3 [shape = 'u8[8192]{0}', space=vmem, size = 0x2000, scoped, tag = 'input window, operand 1, single buffered']
    #allocation4 [shape = 's32[1]{0}', space=sflag, size = 0x4, scoped, tag = 'scoped memory for tpu_custom_call.1']
    #allocation5 [shape = 's32[1]{0}', space=sflag, size = 0x4, scoped, tag = 'scoped memory for tpu_custom_call.1']
    #allocation6 [shape = 'u8[8192]{0}', space=vmem, size = 0x2000, scoped, tag = 'output window, operand 0, single buffered']
    %8 = vsyncpa [#allocation4], 0
    %9 = vsyncpa [#allocation5], 0
    // Predicated region
    $region2: #{tpu_custom_call.1} parent=1 // pred_check
      _
    $region3: #{tpu_custom_call.1} parent=1 // pred_check_branch
      %11 = sbr.rel (0) target = $region5
    $region4: #{tpu_custom_call.1} parent=1 // pred_region
      _
    $region5: #{tpu_custom_call.1} parent=1 // pred_fallthru
      _
    // Predicated region
    $region6: #{tpu_custom_call.1} parent=1 // pred_check
      _
    $region7: #{tpu_custom_call.1} parent=1 // pred_check_branch
      %13 = sbr.rel (0) target = $region9
    $region8: #{tpu_custom_call.1} parent=1 // pred_region
      %15 = vsyncadd [#allocation4], 0
      %s17 = sshll.u32 %s1, 4
      %s18 = int_to_ptr.hbm [resolvable:$true] %s17
      %s19 = sshll.u32 [#allocation3], 4
      %s20 = int_to_ptr.vmem [resolvable:$true] %s19
      %22 = dma.hbm_to_vmem [thread:$0]  %s18, 256, %s20, [#allocation4]
    $region9: #{tpu_custom_call.1} parent=1 // pred_fallthru
      _
    // Predicated region
    $region10: #{tpu_custom_call.1} parent=1 // pred_check
      _
    $region11: #{tpu_custom_call.1} parent=1 // pred_check_branch
      %24 = sbr.rel (0) target = $region13
    $region12: #{tpu_custom_call.1} parent=1 // pred_region
      %26 = dma.done [#allocation4], 256
    $region13: #{tpu_custom_call.1} parent=1 // pred_fallthru
      _
    %s27 = sld [smem:[#allocation2]]
    %v28 = vld [vmem:[#allocation3] sm:$0xff]
    %v29 = vld [vmem:[#allocation3 + $0x8] sm:$0xff]
    %v30 = vstv %s27
    %v31 = vrcp.pop %v30
    %v32 = vmul.f32 %v30, %v31
    %v33 = vsub.f32 1.0, %v32
    %v34 = vmul.f32 %v31, %v33
    %v35 = vadd.f32 %v31, %v34
    %vm36 = vweird.f32 %v30
    %vm37 = vweird.f32 %v31
    %vm38 = vmor %vm36, %vm37
    %v39 = vsel %vm38, %v31, %v35
    %v40 = vand.u32 2147483647, %v30
    %vm41 = vcmp.eq.f32.partialorder %v40, 8.507059e+37
    %v42 = vand.u32 %v30, 2147483648
    %v43 = vor.u32 1.1754944e-38, %v42
    %v44 = vsel %vm41, %v43, %v39
    %v45 = vmul.f32 %v28, %v44
    %v46 = vmul.f32 %v29, %v44
    %v47 = vmax.f32 %v45, -8.0
    %v48 = vmax.f32 %v46, -8.0
    %v49 = vmin.f32 %v47, 7.0
    %v50 = vmin.f32 %v48, 7.0
    %v51 = vround.ne.pseudo %v49
    %v52 = vround.ne.pseudo %v50
    %v53 = vmul.f32 %v51, %v30
    %v54 = vmul.f32 %v52, %v30
    %55 = vst [vmem:[#allocation6] sm:$0xff] %v53
    %56 = vst [vmem:[#allocation6 + $0x8] sm:$0xff] %v54
    // Predicated region
    $region14: #{tpu_custom_call.1} parent=1 // pred_check
      _
    $region15: #{tpu_custom_call.1} parent=1 // pred_check_branch
      %58 = sbr.rel (0) target = $region17
    $region16: #{tpu_custom_call.1} parent=1 // pred_region
      %60 = vsyncadd [#allocation5], 0
      %s62 = sshll.u32 [#allocation6], 4
      %s63 = int_to_ptr.vmem [resolvable:$true] %s62
      %s64 = sshll.u32 %s2, 4
      %s65 = int_to_ptr.hbm [resolvable:$true] %s64
      %67 = dma.vmem_to_hbm [thread:$0]  %s63, 256, %s65, [#allocation5]
    $region17: #{tpu_custom_call.1} parent=1 // pred_fallthru
      _
    // Predicated region
    $region18: #{tpu_custom_call.1} parent=1 // pred_check
      _
    $region19: #{tpu_custom_call.1} parent=1 // pred_check_branch
      %69 = sbr.rel (0) target = $region21
    $region20: #{tpu_custom_call.1} parent=1 // pred_region
      %71 = dma.done [#allocation5], 256
    $region21: #{tpu_custom_call.1} parent=1 // pred_fallthru
      _
    %72 = vsyncpa [#allocation4], 1
    %73 = vsyncpa [#allocation5], 1

</llo_original>
